<compile_context>
chip_gen: v5e
topology: v5e:2x2
jax: 0.10.0
libtpu: 0.0.40
codegen_flags: <defaults>
</compile_context>

<pallas_src>
import jax
import jax.numpy as jnp
from jax import lax
from jax.experimental import pallas as pl
from jax.experimental.pallas import tpu as pltpu


def _round_up(x: int, m: int) -> int:
    return ((x + m - 1) // m) * m


def _pick_tile(dim_pad: int, target: int) -> int:
    """Largest multiple of 128 that divides dim_pad (a 128-multiple) and is <= target."""
    n = dim_pad // 128
    t = max(target // 128, 1)
    for d in range(min(n, t), 0, -1):
        if n % d == 0:
            return d * 128
    return 128


def _linear_kernel_acc(x_ref, w_ref, b_ref, o_ref, acc_ref):
    # x_ref : [tm, tk]   activation tile
    # w_ref : [tn, tk]   weight tile, native PyTorch [num_classes, embed_dim] layout
    # b_ref : [1,  tn]   bias tile
    # o_ref : [tm, tn]   output tile
    # acc_ref:[tm, tn]   f32 accumulator, persists across the k (reduction) axis
    k = pl.program_id(2)

    @pl.when(k == 0)
    def _():
        acc_ref[...] = jnp.zeros_like(acc_ref)

    # y += x @ W^T : contract x dim 1 with w dim 1 (MXU takes the transposed RHS
    # natively, no materialized transpose).
    acc_ref[...] += lax.dot_general(
        x_ref[...], w_ref[...],
        dimension_numbers=(((1,), (1,)), ((), ())),
        preferred_element_type=jnp.float32,
    )

    @pl.when(k == pl.num_programs(2) - 1)
    def _():
        o_ref[...] = (acc_ref[...] + b_ref[...].astype(jnp.float32)).astype(o_ref.dtype)


def _linear_kernel_single_k(x_ref, w_ref, b_ref, o_ref):
    # Whole reduction fits in one K tile: skip the scratch-accumulator round trip.
    acc = lax.dot_general(
        x_ref[...], w_ref[...],
        dimension_numbers=(((1,), (1,)), ((), ())),
        preferred_element_type=jnp.float32,
    )
    o_ref[...] = (acc + b_ref[...].astype(jnp.float32)).astype(o_ref.dtype)


def classification_head(x, weight, bias, *, use_pallas=None,
                        tm_max=512, tn_max=1024, tk_max=1024):
    """Pallas equivalent of nn.Linear(embed_dim, num_classes).forward(x).

    Args:
      x:      [..., embed_dim]
      weight: [num_classes, embed_dim]  (native PyTorch layout, NOT transposed)
      bias:   [num_classes]
    Returns:
      [..., num_classes] with x.dtype
    """
    *lead, D = x.shape
    C, D2 = weight.shape
    assert D == D2, "embed_dim mismatch"
    assert bias.shape == (C,)

    B = 1
    for s in lead:
        B *= s
    x2d = x.reshape(B, D)

    if use_pallas is None:
        # Tiny heads: pad + pallas launch + slice is pure overhead vs a fused XLA dot.
        use_pallas = (2 * B * C * D) >= (1 << 24)
    if not use_pallas:
        out = (x2d @ weight.T + bias).astype(x.dtype)
        return out.reshape(*lead, C)

    itemsize = jnp.dtype(x.dtype).itemsize
    sub = {4: 8, 2: 16, 1: 32}.get(itemsize, 8)   # min sublane tile per dtype

    # ---- tile selection ----------------------------------------------------
    C_pad = _round_up(C, 128)
    D_pad = _round_up(D, 128)
    tn = _pick_tile(C_pad, tn_max)       # divides C_pad -> no extra weight pad
    tk = _pick_tile(D_pad, tk_max)       # divides D_pad -> no dead-K work
    tm = min(_round_up(B, sub), _round_up(tm_max, sub))
    B_pad = _round_up(B, tm)

    gi, gj, gk = B_pad // tm, C_pad // tn, D_pad // tk

    # v7x has 2 TensorCores: keep at least one "parallel" axis with extent >= 2
    # when the batch axis collapses to a single tile.
    if gi == 1 and gj == 1 and C_pad >= 256:
        tn = _pick_tile(C_pad, C_pad // 2)
        gj = C_pad // tn

    # ---- zero-pad to tile multiples (skipped entirely when already aligned) --
    def pad2(a, r, c):
        return a if (r == 0 and c == 0) else jnp.pad(a, ((0, r), (0, c)))

    x_p = pad2(x2d, B_pad - B, D_pad - D)
    w_p = pad2(weight, C_pad - C, D_pad - D)
    b_p = (bias if C_pad == C else jnp.pad(bias, (0, C_pad - C))).reshape(1, C_pad)

    cost = pl.CostEstimate(
        flops=2 * B_pad * D_pad * C_pad,
        transcendentals=0,
        bytes_accessed=(B_pad * D_pad * gj         # x re-read once per class tile
                        + C_pad * D_pad * gi       # weight re-read once per batch tile
                        + C_pad
                        + B_pad * C_pad) * itemsize,
    )

    cparams = pltpu.CompilerParams(
        dimension_semantics=(("parallel", "parallel", "arbitrary") if gk > 1
                             else ("parallel", "parallel")),
        vmem_limit_bytes=32 * 1024 * 1024,
    )

    if gk > 1:
        kernel = _linear_kernel_acc
        grid_spec = pltpu.PrefetchScalarGridSpec(
            num_scalar_prefetch=0,
            grid=(gi, gj, gk),
            in_specs=[
                pl.BlockSpec((tm, tk), lambda i, j, k: (i, k)),   # x
                pl.BlockSpec((tn, tk), lambda i, j, k: (j, k)),   # weight [C, D]
                pl.BlockSpec((1, tn), lambda i, j, k: (0, j)),    # bias
            ],
            out_specs=pl.BlockSpec((tm, tn), lambda i, j, k: (i, j)),
            scratch_shapes=[pltpu.VMEM((tm, tn), jnp.float32)],
        )
    else:
        kernel = _linear_kernel_single_k
        grid_spec = pltpu.PrefetchScalarGridSpec(
            num_scalar_prefetch=0,
            grid=(gi, gj),
            in_specs=[
                pl.BlockSpec((tm, tk), lambda i, j: (i, 0)),      # x
                pl.BlockSpec((tn, tk), lambda i, j: (j, 0)),      # weight [C, D]
                pl.BlockSpec((1, tn), lambda i, j: (0, j)),       # bias
            ],
            out_specs=pl.BlockSpec((tm, tn), lambda i, j: (i, j)),
            scratch_shapes=[],
        )

    out_p = pl.pallas_call(
        kernel,
        out_shape=jax.ShapeDtypeStruct((B_pad, C_pad), x.dtype),
        grid_spec=grid_spec,
        compiler_params=cparams,
        cost_estimate=cost,
    )(x_p, w_p, b_p)

    # Slice only when padding actually happened (extra HBM copy otherwise avoided).
    out = out_p if (B_pad == B and C_pad == C) else out_p[:B, :C]
    return out.reshape(*lead, C)


if __name__ == "__main__":
    key = jax.random.PRNGKey(0)
    kx, kw, kb, kx2, kw2, kb2 = jax.random.split(key, 6)

    # Small shapes consistent with the module: batch=2, embed_dim=32, num_classes=10.
    batch, embed_dim, num_classes = 2, 32, 10
    x = jax.random.normal(kx, (batch, embed_dim), dtype=jnp.float32)
    weight = jax.random.normal(kw, (num_classes, embed_dim), dtype=jnp.float32) * 0.02
    bias = jax.random.normal(kb, (num_classes,), dtype=jnp.float32) * 0.01
    ref = x @ weight.T + bias

    # Force the Pallas path so the kernel itself compiles and runs at toy size
    # (the default heuristic would choose the fused-XLA fallback here).
    out = jax.block_until_ready(classification_head(x, weight, bias, use_pallas=True))
    assert out.shape == (batch, num_classes)
    assert jnp.allclose(out, ref, atol=1e-5, rtol=1e-5)

    # Default (heuristic) path — small-shape XLA fallback — must match too.
    out_fb = jax.block_until_ready(classification_head(x, weight, bias))
    assert jnp.allclose(out_fb, ref, atol=1e-5, rtol=1e-5)

    # Exercise the K-tiled accumulator path (gk > 1) at small size by capping tk.
    b2, d2, c2 = 8, 384, 256
    x2 = jax.random.normal(kx2, (b2, d2), dtype=jnp.float32)
    w2 = jax.random.normal(kw2, (c2, d2), dtype=jnp.float32) * 0.02
    bi2 = jax.random.normal(kb2, (c2,), dtype=jnp.float32) * 0.01
    ref2 = x2 @ w2.T + bi2
    out2 = jax.block_until_ready(
        classification_head(x2, w2, bi2, use_pallas=True, tk_max=128))
    assert out2.shape == (b2, c2)
    assert jnp.allclose(out2, ref2, atol=1e-4, rtol=1e-4)

    print("KERNEL_OK")
</pallas_src>

<mosaic_0001>
module attributes {stable_mosaic.version = 11 : i64} {
  func.func @_linear_kernel_single_k(%arg0: i32, %arg1: i32, %arg2: memref<8x128xf32, #tpu.memory_space<vmem>>, %arg3: memref<128x128xf32, #tpu.memory_space<vmem>>, %arg4: memref<1x128xf32, #tpu.memory_space<vmem>>, %arg5: memref<8x128xf32, #tpu.memory_space<vmem>>) attributes {dimension_semantics = [#tpu.dimension_semantics<parallel>, #tpu.dimension_semantics<parallel>], iteration_bounds = array<i64: 1, 1>, scalar_prefetch = 0 : i64, scratch_operands = 0 : i64, tpu.core_type = #tpu.core_type<tc>, window_params = [{transform_indices = @transform_0, window_bounds = array<i64: 8, 128>}, {transform_indices = @transform_1, window_bounds = array<i64: 128, 128>}, {transform_indices = @transform_2, window_bounds = array<i64: 1, 128>}, {transform_indices = @transform_3, window_bounds = array<i64: 8, 128>}]} {
    %c0 = arith.constant 0 : index
    %c0_0 = arith.constant 0 : index
    %0 = vector.load %arg2[%c0, %c0_0] : memref<8x128xf32, #tpu.memory_space<vmem>>, vector<8x128xf32>
    %c0_1 = arith.constant 0 : index
    %c0_2 = arith.constant 0 : index
    %1 = vector.load %arg3[%c0_1, %c0_2] : memref<128x128xf32, #tpu.memory_space<vmem>>, vector<128x128xf32>
    %cst = arith.constant dense<0.000000e+00> : vector<8x128xf32>
    %2 = tpu.matmul %0, %1, %cst {dimension_numbers = #tpu.dot_dimension_numbers<[1], [1], [0], [0], [0, 0, 1, 0], [], []>} : vector<8x128xf32>, vector<128x128xf32>, vector<8x128xf32> -> vector<8x128xf32>
    %c0_3 = arith.constant 0 : index
    %c0_4 = arith.constant 0 : index
    %3 = vector.load %arg4[%c0_3, %c0_4] : memref<1x128xf32, #tpu.memory_space<vmem>>, vector<1x128xf32>
    %4 = vector.broadcast %3 : vector<1x128xf32> to vector<8x128xf32>
    %5 = arith.addf %2, %4 : vector<8x128xf32>
    %c0_5 = arith.constant 0 : index
    %c0_6 = arith.constant 0 : index
    %6 = vector.load %arg5[%c0_5, %c0_6] : memref<8x128xf32, #tpu.memory_space<vmem>>, vector<8x128xf32>
    tpu.vector_store %arg5[%c0_5, %c0_6], %5 {strides = array<i32>} : memref<8x128xf32, #tpu.memory_space<vmem>>, vector<8x128xf32>,
    return
  }
  func.func @transform_0(%arg0: i32, %arg1: i32) -> (i32, i32) {
    %c0_i32 = arith.constant 0 : i32
    %c0_i32_0 = arith.constant 0 : i32
    return %arg0, %c0_i32 : i32, i32
  }
  func.func @transform_1(%arg0: i32, %arg1: i32) -> (i32, i32) {
    %c0_i32 = arith.constant 0 : i32
    %c0_i32_0 = arith.constant 0 : i32
    return %arg1, %c0_i32 : i32, i32
  }
  func.func @transform_2(%arg0: i32, %arg1: i32) -> (i32, i32) {
    %c0_i32 = arith.constant 0 : i32
    %c0_i32_0 = arith.constant 0 : i32
    return %c0_i32, %arg1 : i32, i32
  }
  func.func @transform_3(%arg0: i32, %arg1: i32) -> (i32, i32) {
    %c0_i32 = arith.constant 0 : i32
    return %arg0, %arg1 : i32, i32
  }
}

</mosaic_0001>

<llo_original>
// kernel: tpu_custom_call.1
$region0: #{tpu_custom_call.1}
  #allocation0 [shape = 'u32[]', space=smem, size = 0x4, offset = 0x4, fixed_abs, tag = 'smem constant byte address 0x4 - core index']
  #allocation1 [shape = 'u32[72,128]{1,0:T(1,128)}', space=vmem, size = 0x9000, scoped, tag = 'internal scratch']
  %s0 = inlined_call_operand.hbm [shape: f32[8,128], index: 0, kind: input, shape index: {}]
  %s1 = inlined_call_operand.hbm [shape: f32[128,128], index: 1, kind: input, shape index: {}]
  %s2 = inlined_call_operand.vmem [shape: f32[1,128], index: 2, kind: input, shape index: {}]
  %s3 = inlined_call_operand.hbm [shape: f32[8,128], index: 3, kind: output, shape index: {}]
  %s4 = sld [smem:[#allocation0]]
  $region30: #{tpu_custom_call.1} parent=0
    _
  %s6 = ssub.s32 1, %s4
  %s7 = scalar_select 0, %s6, %s4
  $region1: #{tpu_custom_call.1} parent=0
    #allocation2 [shape = 'u8[4096]{0}', space=vmem, size = 0x1000, scoped, tag = 'input window, operand 0, single buffered']
    #allocation3 [shape = 's32[1]{0}', space=sflag, size = 0x4, scoped, tag = 'scoped memory for tpu_custom_call.1']
    #allocation4 [shape = 's32[1]{0}', space=sflag, size = 0x4, scoped, tag = 'scoped memory for tpu_custom_call.1']
    #allocation5 [shape = 'u8[65536]{0}', space=vmem, size = 0x10000, scoped, tag = 'input window, operand 1, single buffered']
    #allocation6 [shape = 's32[1]{0}', space=sflag, size = 0x4, scoped, tag = 'scoped memory for tpu_custom_call.1']
    #allocation7 [shape = 'u8[4096]{0}', space=vmem, size = 0x1000, scoped, tag = 'output window, operand 0, single buffered']
    %8 = vsyncpa [#allocation3], 0
    %9 = vsyncpa [#allocation6], 0
    %10 = vsyncpa [#allocation4], 0
    // Predicated region
    $region2: #{tpu_custom_call.1} parent=1 // pred_check
      _
    $region3: #{tpu_custom_call.1} parent=1 // pred_check_branch
      %12 = sbr.rel (0) target = $region5
    $region4: #{tpu_custom_call.1} parent=1 // pred_region
      %14 = vsyncadd [#allocation3], 0
      %s16 = sshll.u32 %s0, 4
      %s17 = int_to_ptr.hbm [resolvable:$true] %s16
      %s18 = sshll.u32 [#allocation2], 4
      %s19 = int_to_ptr.vmem [resolvable:$true] %s18
      %21 = dma.hbm_to_vmem [thread:$0]  %s17, 128, %s19, [#allocation3]
    $region5: #{tpu_custom_call.1} parent=1 // pred_fallthru
      _
    // Predicated region
    $region6: #{tpu_custom_call.1} parent=1 // pred_check
      _
    $region7: #{tpu_custom_call.1} parent=1 // pred_check_branch
      %23 = sbr.rel (0) target = $region9
    $region8: #{tpu_custom_call.1} parent=1 // pred_region
      %25 = vsyncadd [#allocation6], 0
      %s26 = sshll.u32 %s1, 4
      %s27 = int_to_ptr.hbm [resolvable:$true] %s26
      %s28 = sshll.u32 [#allocation5], 4
      %s29 = int_to_ptr.vmem [resolvable:$true] %s28
      %34 = dma.hbm_to_vmem [thread:$0]  %s27, 2048, %s29, [#allocation6], 128, 128, 8
    $region9: #{tpu_custom_call.1} parent=1 // pred_fallthru
      _
    // Predicated region
    $region10: #{tpu_custom_call.1} parent=1 // pred_check
      _
    $region11: #{tpu_custom_call.1} parent=1 // pred_check_branch
      %36 = sbr.rel (0) target = $region13
    $region12: #{tpu_custom_call.1} parent=1 // pred_region
      _
    $region13: #{tpu_custom_call.1} parent=1 // pred_fallthru
      _
    // Predicated region
    $region14: #{tpu_custom_call.1} parent=1 // pred_check
      _
    $region15: #{tpu_custom_call.1} parent=1 // pred_check_branch
      %38 = sbr.rel (0) target = $region17
    $region16: #{tpu_custom_call.1} parent=1 // pred_region
      %40 = dma.done [#allocation3], 128
    $region17: #{tpu_custom_call.1} parent=1 // pred_fallthru
      _
    // Predicated region
    $region18: #{tpu_custom_call.1} parent=1 // pred_check
      _
    $region19: #{tpu_custom_call.1} parent=1 // pred_check_branch
      %42 = sbr.rel (0) target = $region21
    $region20: #{tpu_custom_call.1} parent=1 // pred_region
      %44 = dma.done [#allocation6], 2048
    $region21: #{tpu_custom_call.1} parent=1 // pred_fallthru
      _
    %v45 = vld [vmem:[#allocation2] sm:$0xff]
    %v46 = vld [vmem:[#allocation5] sm:$0xff]
    %v47 = vld [vmem:[#allocation5 + $0x8] sm:$0xff]
    %v48 = vld [vmem:[#allocation5 + $0x10] sm:$0xff]
    %v49 = vld [vmem:[#allocation5 + $0x18] sm:$0xff]
    %v50 = vld [vmem:[#allocation5 + $0x20] sm:$0xff]
    %v51 = vld [vmem:[#allocation5 + $0x28] sm:$0xff]
    %v52 = vld [vmem:[#allocation5 + $0x30] sm:$0xff]
    %v53 = vld [vmem:[#allocation5 + $0x38] sm:$0xff]
    %v54 = vld [vmem:[#allocation5 + $0x40] sm:$0xff]
    %v55 = vld [vmem:[#allocation5 + $0x48] sm:$0xff]
    %v56 = vld [vmem:[#allocation5 + $0x50] sm:$0xff]
    %v57 = vld [vmem:[#allocation5 + $0x58] sm:$0xff]
    %v58 = vld [vmem:[#allocation5 + $0x60] sm:$0xff]
    %v59 = vld [vmem:[#allocation5 + $0x68] sm:$0xff]
    %v60 = vld [vmem:[#allocation5 + $0x70] sm:$0xff]
    %v61 = vld [vmem:[#allocation5 + $0x78] sm:$0xff]
    %v62 = vld [vmem:[%s2] sm:$0x1]
    %v64 = vperm.slane %v62, 0
    %66 = vmatpush.xpose.msra.mxu0 %v61
    %67 = vmatpush.xpose.msra.mxu0 %v60
    %68 = vmatpush.xpose.msra.mxu0 %v59
    %69 = vmatpush.xpose.msra.mxu0 %v58
    %70 = vmatpush.xpose.msra.mxu0 %v57
    %71 = vmatpush.xpose.msra.mxu0 %v56
    %72 = vmatpush.xpose.msra.mxu0 %v55
    %73 = vmatpush.xpose.msra.mxu0 %v54
    %74 = vmatpush.xpose.msra.mxu0 %v53
    %75 = vmatpush.xpose.msra.mxu0 %v52
    %76 = vmatpush.xpose.msra.mxu0 %v51
    %77 = vmatpush.xpose.msra.mxu0 %v50
    %78 = vmatpush.xpose.msra.mxu0 %v49
    %79 = vmatpush.xpose.msra.mxu0 %v48
    %80 = vmatpush.xpose.msra.mxu0 %v47
    %81 = vmatpush.xpose.msra.mxu0 %v46
    %82 = vmatmul.f32.gmra.mxu0 %v45
    %v83 = vpop.f32.mrf.mxu0
    %v84 = vadd.f32 %v64, %v83
    %85 = vdwg.mxu0
    %86 = vst [vmem:[#allocation7] sm:$0xff] %v84
    // Predicated region
    $region22: #{tpu_custom_call.1} parent=1 // pred_check
      _
    $region23: #{tpu_custom_call.1} parent=1 // pred_check_branch
      %88 = sbr.rel (0) target = $region25
    $region24: #{tpu_custom_call.1} parent=1 // pred_region
      %90 = vsyncadd [#allocation4], 0
      %s92 = sshll.u32 [#allocation7], 4
      %s93 = int_to_ptr.vmem [resolvable:$true] %s92
      %s94 = sshll.u32 %s3, 4
      %s95 = int_to_ptr.hbm [resolvable:$true] %s94
      %97 = dma.vmem_to_hbm [thread:$0]  %s93, 128, %s95, [#allocation4]
    $region25: #{tpu_custom_call.1} parent=1 // pred_fallthru
      _
    // Predicated region
    $region26: #{tpu_custom_call.1} parent=1 // pred_check
      _
    $region27: #{tpu_custom_call.1} parent=1 // pred_check_branch
      %99 = sbr.rel (0) target = $region29
    $region28: #{tpu_custom_call.1} parent=1 // pred_region
      %101 = dma.done [#allocation4], 128
    $region29: #{tpu_custom_call.1} parent=1 // pred_fallthru
      _
    %102 = vsyncpa [#allocation3], 1
    %103 = vsyncpa [#allocation6], 1
    %104 = vsyncpa [#allocation4], 1

</llo_original>
